<compile_context>
chip_gen: v5e
topology: v5e:2x2
jax: 0.10.0
libtpu: 0.0.40
codegen_flags: <defaults>
</compile_context>

<pallas_src>
import functools

import jax
import jax.numpy as jnp
from jax.experimental import pallas as pl
from jax.experimental.pallas import tpu as pltpu


# ---------------------------------------------------------------------------
# VPSDE discrete schedules (plain-JAX parameter setup / glue)
# ---------------------------------------------------------------------------
def make_vpsde(beta_min: float = 0.1, beta_max: float = 20.0, N: int = 1000):
    betas = jnp.linspace(beta_min / N, beta_max / N, N, dtype=jnp.float32)
    alphas = 1.0 - betas
    alphas_cumprod = jnp.cumprod(alphas)
    return dict(
        N=N,
        discrete_betas=betas,
        alphas=alphas,
        alphas_cumprod=alphas_cumprod,
        sqrt_alphas_cumprod=jnp.sqrt(alphas_cumprod),
        sqrt_1m_alphas_cumprod=jnp.sqrt(1.0 - alphas_cumprod),
    )


# ---------------------------------------------------------------------------
# Pallas kernel: TB batch rows per step, channels as lane slices, per-row
# partial sums written to the step's own output block.
# ---------------------------------------------------------------------------
def _ddpm_noise_loss_kernel(x_ref, noise_ref, side_ref, w_ref, part_ref, *,
                            C, L, B, TB, needs_mask):
    # In-kernel upcast: HBM traffic stays at the input's native width.
    x = x_ref[...].astype(jnp.float32)        # (TB, C*L)
    n = noise_ref[...].astype(jnp.float32)    # (TB, C*L)

    side = side_ref[...]                      # (TB, 3+C) f32 packed side inputs
    sx = side[:, 0:1]                         # sqrt_ac[t]        (TB, 1)
    sn = side[:, 1:2]                         # sqrt_1m_ac[t]     (TB, 1)
    wgt = side[:, 2:3]                        # per-batch weight  (TB, 1)

    # perturbed_data = x * sqrt_ac[t] + sqrt_1m_ac[t] * noise  (lane-broadcast)
    pert = x * sx + sn * n                    # (TB, C*L)

    # Synthetic model: 1x1-conv channel mix as an unrolled VPU MAC over lane
    # slices (no MXU for tiny C), plus the pre-folded time-conditioned bias.
    # Accumulate the squared error across output channels into one slab.
    se = None
    for i in range(C):
        pred_i = w_ref[i, 0] * pert[:, 0:L]                   # (TB, L)
        for c in range(1, C):
            pred_i = pred_i + w_ref[i, c] * pert[:, c * L:(c + 1) * L]
        pred_i = pred_i + side[:, 3 + i:4 + i]                # bias_i (TB, 1)
        d = pred_i - n[:, i * L:(i + 1) * L]
        sq = d * d
        se = sq if se is None else se + sq

    # One XLU lane-reduce per row, then the cheap per-batch weighting.
    row = jnp.sum(se, axis=-1, keepdims=True) * wgt           # (TB, 1)

    if needs_mask:
        # Short last block: zero out rows past B (jnp.where also kills any
        # NaN/Inf coming from the unwritten out-of-bounds VMEM region).
        g = pl.program_id(0)
        rid = g * TB + jax.lax.broadcasted_iota(jnp.int32, (TB, 1), 0)
        row = jnp.where(rid < B, row, 0.0)

    part_ref[0] = row                                         # (TB, 1) block row


# ---------------------------------------------------------------------------
# VMEM-budget-aware batch-tile selection (padding- and generation-aware)
# ---------------------------------------------------------------------------
def _round_up(v, m):
    return ((v + m - 1) // m) * m


def _padded_rows(rows, itemsize):
    # Sublane packing granularity: 8 rows for f32, 16 for bf16, 32 for int8.
    pack = max(1, 4 // max(itemsize, 1)) * 8
    return _round_up(rows, pack)


def _vmem_capacity_bytes():
    try:
        info = pltpu.get_tpu_info()
        cap = getattr(info, "vmem_capacity_bytes", None)
        if cap:
            return int(cap)
    except Exception:
        pass
    return 64 * 1024 * 1024   # conservative fallback (v7x per-TC VMEM)


def _choose_batch_tile(B, C, L, x_itemsize, n_itemsize, budget_bytes):
    """Largest batch tile (full B, or a multiple of 8) whose padded,
    double-buffered working set fits the VMEM budget."""
    lanes = _round_up(C * L, 128)

    def cost(tb):
        b = 0
        for it in (x_itemsize, n_itemsize):       # x and noise streams
            b += 2 * _padded_rows(tb, it) * lanes * it
        b += 2 * _round_up(tb, 8) * 128 * 4       # packed side-input block
        b += 2 * 8 * 128 * 4                      # per-step partial output
        return b

    if cost(B) <= budget_bytes:
        return B
    tb = 8
    while tb + 8 <= B and cost(tb + 8) <= budget_bytes:
        tb += 8
    return min(tb, B)


# ---------------------------------------------------------------------------
# Wrapper (glue: layout, schedule gather, weighting branch, pallas_call)
# ---------------------------------------------------------------------------
def ddpm_noise_loss(x, noise, t, conv_w, conv_b, sde, *,
                    reduce_mean: bool = True,
                    likelihood_weighting: bool = False,
                    x0_weighting: bool = False):
    B, C, H, W = x.shape
    L = H * W
    CL = C * L
    x2 = x.reshape(B, CL)                     # free reshape, native dtype
    n2 = noise.reshape(B, CL)

    s_a = sde["sqrt_alphas_cumprod"][t].astype(jnp.float32)        # (B,)
    s_1m = sde["sqrt_1m_alphas_cumprod"][t].astype(jnp.float32)    # (B,)

    if likelihood_weighting:
        wgt = sde["discrete_betas"][t] / (
            2.0 * sde["alphas"][t] * (1.0 - sde["alphas_cumprod"][t]))
    elif x0_weighting:
        wgt = (1.0 - sde["alphas_cumprod"][t]) / sde["alphas_cumprod"][t]
    else:
        wgt = jnp.ones((B,), jnp.float32)
    wgt = wgt.astype(jnp.float32)

    t_norm = t.astype(jnp.float32) / float(sde["N"])
    bias = t_norm[:, None] * conv_b[:, 0].astype(jnp.float32)[None, :]  # (B, C)

    # Single packed side-input array: [sqrt_ac, sqrt_1m_ac, weight, bias_0..C-1]
    side = jnp.concatenate(
        [s_a[:, None], s_1m[:, None], wgt[:, None], bias], axis=1)      # (B, 3+C)

    cap = _vmem_capacity_bytes()
    budget = int(cap * 0.4)                     # leave headroom for compiler scratch
    TB = _choose_batch_tile(B, C, L,
                            jnp.dtype(x.dtype).itemsize,
                            jnp.dtype(noise.dtype).itemsize,
                            budget)
    G = (B + TB - 1) // TB

    kernel = functools.partial(_ddpm_noise_loss_kernel, C=C, L=L, B=B, TB=TB,
                               needs_mask=(B % TB != 0))

    partials = pl.pallas_call(
        kernel,
        out_shape=jax.ShapeDtypeStruct((G, TB, 1), jnp.float32),
        grid=(G,),
        in_specs=[
            pl.BlockSpec((TB, CL), lambda g: (g, 0)),        # x        (native dtype)
            pl.BlockSpec((TB, CL), lambda g: (g, 0)),        # noise    (native dtype)
            pl.BlockSpec((TB, 3 + C), lambda g: (g, 0)),     # packed side inputs
            pl.BlockSpec(memory_space=pltpu.SMEM),           # conv weight (C, C)
        ],
        out_specs=pl.BlockSpec((1, TB, 1), lambda g: (g, 0, 0)),  # per-step partials
        compiler_params=pltpu.CompilerParams(
            dimension_semantics=("parallel",),               # megacore-shardable
            vmem_limit_bytes=int(cap * 0.7)),
    )(x2, n2, side, conv_w.astype(jnp.float32))

    # reduce_mean=True  -> mean over all elements   = total_sum / (B*C*H*W)
    # reduce_mean=False -> mean of per-batch sums   = total_sum / B
    denom = float(B * C * L) if reduce_mean else float(B)
    return jnp.sum(partials) / denom


# ---------------------------------------------------------------------------
# Pure-JAX reference (mirrors the PyTorch forward exactly)
# ---------------------------------------------------------------------------
def ddpm_noise_loss_ref(x, noise, t, conv_w, conv_b, sde, *,
                        reduce_mean=True, likelihood_weighting=False,
                        x0_weighting=False):
    B, C, H, W = x.shape
    s_a = sde["sqrt_alphas_cumprod"][t][:, None, None, None]
    s_1m = sde["sqrt_1m_alphas_cumprod"][t][:, None, None, None]
    perturbed = x * s_a + s_1m * noise

    if likelihood_weighting:
        wgt = (sde["discrete_betas"][t] /
               (2.0 * sde["alphas"][t] * (1.0 - sde["alphas_cumprod"][t])))
    elif x0_weighting:
        wgt = (1.0 - sde["alphas_cumprod"][t]) / sde["alphas_cumprod"][t]
    else:
        wgt = jnp.ones((B,), jnp.float32)
    wgt = wgt[:, None, None, None]

    t_norm = t.astype(jnp.float32) / float(sde["N"])
    p2 = perturbed.reshape(B, C, H * W)
    pred = (jnp.einsum('ij,bjl->bil', conv_w, p2)
            + conv_b[None, :, :] * t_norm[:, None, None])
    pred = pred.reshape(B, C, H, W)

    losses = jnp.square(pred - noise) * wgt
    if reduce_mean:
        return jnp.mean(losses)
    return jnp.mean(jnp.sum(losses.reshape(B, -1), axis=-1))


# ---------------------------------------------------------------------------
if __name__ == "__main__":
    B, C, H, W = 2, 4, 16, 16
    sde = make_vpsde()

    key = jax.random.PRNGKey(0)
    kx, kn, kt, kw, kb = jax.random.split(key, 5)
    x = jax.random.normal(kx, (B, C, H, W), dtype=jnp.float32)
    noise = jax.random.normal(kn, (B, C, H, W), dtype=jnp.float32)   # torch.randn_like(x)
    t = jax.random.randint(kt, (B,), 0, sde["N"], dtype=jnp.int32)
    conv_w = 0.1 * jax.random.normal(kw, (C, C), dtype=jnp.float32)  # synthetic model params
    conv_b = 0.1 * jax.random.normal(kb, (C, 1), dtype=jnp.float32)

    loss = ddpm_noise_loss(x, noise, t, conv_w, conv_b, sde,
                           reduce_mean=True,
                           likelihood_weighting=False,
                           x0_weighting=False)
    loss = jax.block_until_ready(loss)

    ref = ddpm_noise_loss_ref(x, noise, t, conv_w, conv_b, sde,
                              reduce_mean=True,
                              likelihood_weighting=False,
                              x0_weighting=False)
    assert jnp.allclose(loss, ref, rtol=1e-4, atol=1e-4), (loss, ref)

    print("KERNEL_OK")
</pallas_src>

<mosaic_0001>
module attributes {stable_mosaic.version = 11 : i64} {
  func.func @_ddpm_noise_loss_kernel(%arg0: i32, %arg1: memref<2x1024xf32, #tpu.memory_space<vmem>>, %arg2: memref<2x1024xf32, #tpu.memory_space<vmem>>, %arg3: memref<2x7xf32, #tpu.memory_space<vmem>>, %arg4: memref<4x4xf32, #tpu.memory_space<smem>>, %arg5: memref<1x2x1xf32, #tpu.memory_space<vmem>>) attributes {dimension_semantics = [#tpu.dimension_semantics<parallel>], iteration_bounds = array<i64: 1>, scalar_prefetch = 0 : i64, scratch_operands = 0 : i64, tpu.core_type = #tpu.core_type<tc>, window_params = [{transform_indices = @transform_0, window_bounds = array<i64: 2, 1024>}, {transform_indices = @transform_1, window_bounds = array<i64: 2, 1024>}, {transform_indices = @transform_2, window_bounds = array<i64: 2, 7>}, {transform_indices = @transform_3, window_bounds = array<i64: 4, 4>}, {transform_indices = @transform_4, window_bounds = array<i64: 1, 2, 1>}]} {
    %c0 = arith.constant 0 : index
    %c0_0 = arith.constant 0 : index
    %0 = vector.load %arg1[%c0, %c0_0] : memref<2x1024xf32, #tpu.memory_space<vmem>>, vector<2x1024xf32>
    %c0_1 = arith.constant 0 : index
    %c0_2 = arith.constant 0 : index
    %1 = vector.load %arg2[%c0_1, %c0_2] : memref<2x1024xf32, #tpu.memory_space<vmem>>, vector<2x1024xf32>
    %c0_3 = arith.constant 0 : index
    %c0_4 = arith.constant 0 : index
    %2 = vector.load %arg3[%c0_3, %c0_4] : memref<2x7xf32, #tpu.memory_space<vmem>>, vector<2x7xf32>
    %3 = vector.extract_strided_slice %2 {offsets = [0, 0], sizes = [2, 1], strides = [1, 1]} : vector<2x7xf32> to vector<2x1xf32>
    %4 = vector.extract_strided_slice %2 {offsets = [0, 1], sizes = [2, 1], strides = [1, 1]} : vector<2x7xf32> to vector<2x1xf32>
    %5 = vector.extract_strided_slice %2 {offsets = [0, 2], sizes = [2, 1], strides = [1, 1]} : vector<2x7xf32> to vector<2x1xf32>
    %6 = vector.broadcast %3 : vector<2x1xf32> to vector<2x1024xf32>
    %7 = arith.mulf %0, %6 : vector<2x1024xf32>
    %8 = vector.broadcast %4 : vector<2x1xf32> to vector<2x1024xf32>
    %9 = arith.mulf %8, %1 : vector<2x1024xf32>
    %10 = arith.addf %7, %9 : vector<2x1024xf32>
    %c0_5 = arith.constant 0 : index
    %c0_6 = arith.constant 0 : index
    %11 = memref.load %arg4[%c0_5, %c0_6] : memref<4x4xf32, #tpu.memory_space<smem>>
    %12 = vector.extract_strided_slice %10 {offsets = [0, 0], sizes = [2, 256], strides = [1, 1]} : vector<2x1024xf32> to vector<2x256xf32>
    %13 = vector.broadcast %11 : f32 to vector<2x256xf32>
    %14 = arith.mulf %13, %12 : vector<2x256xf32>
    %c0_7 = arith.constant 0 : index
    %c1 = arith.constant 1 : index
    %15 = memref.load %arg4[%c0_7, %c1] : memref<4x4xf32, #tpu.memory_space<smem>>
    %16 = vector.extract_strided_slice %10 {offsets = [0, 256], sizes = [2, 256], strides = [1, 1]} : vector<2x1024xf32> to vector<2x256xf32>
    %17 = vector.broadcast %15 : f32 to vector<2x256xf32>
    %18 = arith.mulf %17, %16 : vector<2x256xf32>
    %19 = arith.addf %14, %18 : vector<2x256xf32>
    %c0_8 = arith.constant 0 : index
    %c2 = arith.constant 2 : index
    %20 = memref.load %arg4[%c0_8, %c2] : memref<4x4xf32, #tpu.memory_space<smem>>
    %21 = vector.extract_strided_slice %10 {offsets = [0, 512], sizes = [2, 256], strides = [1, 1]} : vector<2x1024xf32> to vector<2x256xf32>
    %22 = vector.broadcast %20 : f32 to vector<2x256xf32>
    %23 = arith.mulf %22, %21 : vector<2x256xf32>
    %24 = arith.addf %19, %23 : vector<2x256xf32>
    %c0_9 = arith.constant 0 : index
    %c3 = arith.constant 3 : index
    %25 = memref.load %arg4[%c0_9, %c3] : memref<4x4xf32, #tpu.memory_space<smem>>
    %26 = vector.extract_strided_slice %10 {offsets = [0, 768], sizes = [2, 256], strides = [1, 1]} : vector<2x1024xf32> to vector<2x256xf32>
    %27 = vector.broadcast %25 : f32 to vector<2x256xf32>
    %28 = arith.mulf %27, %26 : vector<2x256xf32>
    %29 = arith.addf %24, %28 : vector<2x256xf32>
    %30 = vector.extract_strided_slice %2 {offsets = [0, 3], sizes = [2, 1], strides = [1, 1]} : vector<2x7xf32> to vector<2x1xf32>
    %31 = vector.broadcast %30 : vector<2x1xf32> to vector<2x256xf32>
    %32 = arith.addf %29, %31 : vector<2x256xf32>
    %33 = vector.extract_strided_slice %1 {offsets = [0, 0], sizes = [2, 256], strides = [1, 1]} : vector<2x1024xf32> to vector<2x256xf32>
    %34 = arith.subf %32, %33 : vector<2x256xf32>
    %35 = arith.mulf %34, %34 : vector<2x256xf32>
    %c1_10 = arith.constant 1 : index
    %c0_11 = arith.constant 0 : index
    %36 = memref.load %arg4[%c1_10, %c0_11] : memref<4x4xf32, #tpu.memory_space<smem>>
    %37 = vector.extract_strided_slice %10 {offsets = [0, 0], sizes = [2, 256], strides = [1, 1]} : vector<2x1024xf32> to vector<2x256xf32>
    %38 = vector.broadcast %36 : f32 to vector<2x256xf32>
    %39 = arith.mulf %38, %37 : vector<2x256xf32>
    %c1_12 = arith.constant 1 : index
    %c1_13 = arith.constant 1 : index
    %40 = memref.load %arg4[%c1_12, %c1_13] : memref<4x4xf32, #tpu.memory_space<smem>>
    %41 = vector.extract_strided_slice %10 {offsets = [0, 256], sizes = [2, 256], strides = [1, 1]} : vector<2x1024xf32> to vector<2x256xf32>
    %42 = vector.broadcast %40 : f32 to vector<2x256xf32>
    %43 = arith.mulf %42, %41 : vector<2x256xf32>
    %44 = arith.addf %39, %43 : vector<2x256xf32>
    %c1_14 = arith.constant 1 : index
    %c2_15 = arith.constant 2 : index
    %45 = memref.load %arg4[%c1_14, %c2_15] : memref<4x4xf32, #tpu.memory_space<smem>>
    %46 = vector.extract_strided_slice %10 {offsets = [0, 512], sizes = [2, 256], strides = [1, 1]} : vector<2x1024xf32> to vector<2x256xf32>
    %47 = vector.broadcast %45 : f32 to vector<2x256xf32>
    %48 = arith.mulf %47, %46 : vector<2x256xf32>
    %49 = arith.addf %44, %48 : vector<2x256xf32>
    %c1_16 = arith.constant 1 : index
    %c3_17 = arith.constant 3 : index
    %50 = memref.load %arg4[%c1_16, %c3_17] : memref<4x4xf32, #tpu.memory_space<smem>>
    %51 = vector.extract_strided_slice %10 {offsets = [0, 768], sizes = [2, 256], strides = [1, 1]} : vector<2x1024xf32> to vector<2x256xf32>
    %52 = vector.broadcast %50 : f32 to vector<2x256xf32>
    %53 = arith.mulf %52, %51 : vector<2x256xf32>
    %54 = arith.addf %49, %53 : vector<2x256xf32>
    %55 = vector.extract_strided_slice %2 {offsets = [0, 4], sizes = [2, 1], strides = [1, 1]} : vector<2x7xf32> to vector<2x1xf32>
    %56 = vector.broadcast %55 : vector<2x1xf32> to vector<2x256xf32>
    %57 = arith.addf %54, %56 : vector<2x256xf32>
    %58 = vector.extract_strided_slice %1 {offsets = [0, 256], sizes = [2, 256], strides = [1, 1]} : vector<2x1024xf32> to vector<2x256xf32>
    %59 = arith.subf %57, %58 : vector<2x256xf32>
    %60 = arith.mulf %59, %59 : vector<2x256xf32>
    %61 = arith.addf %35, %60 : vector<2x256xf32>
    %c2_18 = arith.constant 2 : index
    %c0_19 = arith.constant 0 : index
    %62 = memref.load %arg4[%c2_18, %c0_19] : memref<4x4xf32, #tpu.memory_space<smem>>
    %63 = vector.extract_strided_slice %10 {offsets = [0, 0], sizes = [2, 256], strides = [1, 1]} : vector<2x1024xf32> to vector<2x256xf32>
    %64 = vector.broadcast %62 : f32 to vector<2x256xf32>
    %65 = arith.mulf %64, %63 : vector<2x256xf32>
    %c2_20 = arith.constant 2 : index
    %c1_21 = arith.constant 1 : index
    %66 = memref.load %arg4[%c2_20, %c1_21] : memref<4x4xf32, #tpu.memory_space<smem>>
    %67 = vector.extract_strided_slice %10 {offsets = [0, 256], sizes = [2, 256], strides = [1, 1]} : vector<2x1024xf32> to vector<2x256xf32>
    %68 = vector.broadcast %66 : f32 to vector<2x256xf32>
    %69 = arith.mulf %68, %67 : vector<2x256xf32>
    %70 = arith.addf %65, %69 : vector<2x256xf32>
    %c2_22 = arith.constant 2 : index
    %c2_23 = arith.constant 2 : index
    %71 = memref.load %arg4[%c2_22, %c2_23] : memref<4x4xf32, #tpu.memory_space<smem>>
    %72 = vector.extract_strided_slice %10 {offsets = [0, 512], sizes = [2, 256], strides = [1, 1]} : vector<2x1024xf32> to vector<2x256xf32>
    %73 = vector.broadcast %71 : f32 to vector<2x256xf32>
    %74 = arith.mulf %73, %72 : vector<2x256xf32>
    %75 = arith.addf %70, %74 : vector<2x256xf32>
    %c2_24 = arith.constant 2 : index
    %c3_25 = arith.constant 3 : index
    %76 = memref.load %arg4[%c2_24, %c3_25] : memref<4x4xf32, #tpu.memory_space<smem>>
    %77 = vector.extract_strided_slice %10 {offsets = [0, 768], sizes = [2, 256], strides = [1, 1]} : vector<2x1024xf32> to vector<2x256xf32>
    %78 = vector.broadcast %76 : f32 to vector<2x256xf32>
    %79 = arith.mulf %78, %77 : vector<2x256xf32>
    %80 = arith.addf %75, %79 : vector<2x256xf32>
    %81 = vector.extract_strided_slice %2 {offsets = [0, 5], sizes = [2, 1], strides = [1, 1]} : vector<2x7xf32> to vector<2x1xf32>
    %82 = vector.broadcast %81 : vector<2x1xf32> to vector<2x256xf32>
    %83 = arith.addf %80, %82 : vector<2x256xf32>
    %84 = vector.extract_strided_slice %1 {offsets = [0, 512], sizes = [2, 256], strides = [1, 1]} : vector<2x1024xf32> to vector<2x256xf32>
    %85 = arith.subf %83, %84 : vector<2x256xf32>
    %86 = arith.mulf %85, %85 : vector<2x256xf32>
    %87 = arith.addf %61, %86 : vector<2x256xf32>
    %c3_26 = arith.constant 3 : index
    %c0_27 = arith.constant 0 : index
    %88 = memref.load %arg4[%c3_26, %c0_27] : memref<4x4xf32, #tpu.memory_space<smem>>
    %89 = vector.extract_strided_slice %10 {offsets = [0, 0], sizes = [2, 256], strides = [1, 1]} : vector<2x1024xf32> to vector<2x256xf32>
    %90 = vector.broadcast %88 : f32 to vector<2x256xf32>
    %91 = arith.mulf %90, %89 : vector<2x256xf32>
    %c3_28 = arith.constant 3 : index
    %c1_29 = arith.constant 1 : index
    %92 = memref.load %arg4[%c3_28, %c1_29] : memref<4x4xf32, #tpu.memory_space<smem>>
    %93 = vector.extract_strided_slice %10 {offsets = [0, 256], sizes = [2, 256], strides = [1, 1]} : vector<2x1024xf32> to vector<2x256xf32>
    %94 = vector.broadcast %92 : f32 to vector<2x256xf32>
    %95 = arith.mulf %94, %93 : vector<2x256xf32>
    %96 = arith.addf %91, %95 : vector<2x256xf32>
    %c3_30 = arith.constant 3 : index
    %c2_31 = arith.constant 2 : index
    %97 = memref.load %arg4[%c3_30, %c2_31] : memref<4x4xf32, #tpu.memory_space<smem>>
    %98 = vector.extract_strided_slice %10 {offsets = [0, 512], sizes = [2, 256], strides = [1, 1]} : vector<2x1024xf32> to vector<2x256xf32>
    %99 = vector.broadcast %97 : f32 to vector<2x256xf32>
    %100 = arith.mulf %99, %98 : vector<2x256xf32>
    %101 = arith.addf %96, %100 : vector<2x256xf32>
    %c3_32 = arith.constant 3 : index
    %c3_33 = arith.constant 3 : index
    %102 = memref.load %arg4[%c3_32, %c3_33] : memref<4x4xf32, #tpu.memory_space<smem>>
    %103 = vector.extract_strided_slice %10 {offsets = [0, 768], sizes = [2, 256], strides = [1, 1]} : vector<2x1024xf32> to vector<2x256xf32>
    %104 = vector.broadcast %102 : f32 to vector<2x256xf32>
    %105 = arith.mulf %104, %103 : vector<2x256xf32>
    %106 = arith.addf %101, %105 : vector<2x256xf32>
    %107 = vector.extract_strided_slice %2 {offsets = [0, 6], sizes = [2, 1], strides = [1, 1]} : vector<2x7xf32> to vector<2x1xf32>
    %108 = vector.broadcast %107 : vector<2x1xf32> to vector<2x256xf32>
    %109 = arith.addf %106, %108 : vector<2x256xf32>
    %110 = vector.extract_strided_slice %1 {offsets = [0, 768], sizes = [2, 256], strides = [1, 1]} : vector<2x1024xf32> to vector<2x256xf32>
    %111 = arith.subf %109, %110 : vector<2x256xf32>
    %112 = arith.mulf %111, %111 : vector<2x256xf32>
    %113 = arith.addf %87, %112 : vector<2x256xf32>
    %cst = arith.constant dense<0.000000e+00> : vector<2xf32>
    %114 = vector.multi_reduction <add>, %113, %cst [1] : vector<2x256xf32> to vector<2xf32>
    %115 = vector.shape_cast %114 : vector<2xf32> to vector<2x1xf32>
    %116 = arith.mulf %115, %5 : vector<2x1xf32>
    %c0_34 = arith.constant 0 : index
    %c0_35 = arith.constant 0 : index
    %c0_36 = arith.constant 0 : index
    %117 = vector.load %arg5[%c0_34, %c0_35, %c0_36] : memref<1x2x1xf32, #tpu.memory_space<vmem>>, vector<1x2x1xf32>
    %118 = vector.shape_cast %117 : vector<1x2x1xf32> to vector<2x1xf32>
    %119 = vector.shape_cast %116 : vector<2x1xf32> to vector<1x2x1xf32>
    tpu.vector_store %arg5[%c0_34, %c0_35, %c0_36], %119 {strides = array<i32>} : memref<1x2x1xf32, #tpu.memory_space<vmem>>, vector<1x2x1xf32>,
    return
  }
  func.func @transform_0(%arg0: i32) -> (i32, i32) {
    %c0_i32 = arith.constant 0 : i32
    %c0_i32_0 = arith.constant 0 : i32
    return %arg0, %c0_i32 : i32, i32
  }
  func.func @transform_1(%arg0: i32) -> (i32, i32) {
    %c0_i32 = arith.constant 0 : i32
    %c0_i32_0 = arith.constant 0 : i32
    return %arg0, %c0_i32 : i32, i32
  }
  func.func @transform_2(%arg0: i32) -> (i32, i32) {
    %c0_i32 = arith.constant 0 : i32
    %c0_i32_0 = arith.constant 0 : i32
    return %arg0, %c0_i32 : i32, i32
  }
  func.func @transform_3(%arg0: i32) -> (i32, i32) {
    %c0_i32 = arith.constant 0 : i32
    %c0_i32_0 = arith.constant 0 : i32
    %c0_i32_1 = arith.constant 0 : i32
    return %c0_i32, %c0_i32_0 : i32, i32
  }
  func.func @transform_4(%arg0: i32) -> (i32, i32, i32) {
    %c0_i32 = arith.constant 0 : i32
    %c0_i32_0 = arith.constant 0 : i32
    %c0_i32_1 = arith.constant 0 : i32
    return %arg0, %c0_i32, %c0_i32_0 : i32, i32, i32
  }
}

</mosaic_0001>

<llo_original>
// kernel: tpu_custom_call.1
$region0: #{tpu_custom_call.1}
  #allocation0 [shape = 'u32[]', space=smem, size = 0x4, offset = 0x4, fixed_abs, tag = 'smem constant byte address 0x4 - core index']
  #allocation1 [shape = 'u32[72,128]{1,0:T(1,128)}', space=vmem, size = 0x9000, scoped, tag = 'internal scratch']
  %s0 = inlined_call_operand.hbm [shape: f32[2,1024], index: 0, kind: input, shape index: {}]
  %s1 = inlined_call_operand.hbm [shape: f32[2,1024], index: 1, kind: input, shape index: {}]
  %s2 = inlined_call_operand.hbm [shape: f32[2,7], index: 2, kind: input, shape index: {}]
  %s3 = inlined_call_operand.hbm [shape: f32[4,4], index: 3, kind: input, shape index: {}]
  %s4 = inlined_call_operand.vmem [shape: f32[1,2,1], index: 4, kind: output, shape index: {}]
  %s5 = sld [smem:[#allocation0]]
  $region42: #{tpu_custom_call.1} parent=0
    _
  %s7 = ssub.s32 1, %s5
  %s8 = scalar_select 0, %s7, %s5
  $region1: #{tpu_custom_call.1} parent=0
    #allocation2 [shape = 'u8[8192]{0}', space=vmem, size = 0x2000, scoped, tag = 'input window, operand 0, single buffered']
    #allocation3 [shape = 's32[1]{0}', space=sflag, size = 0x4, scoped, tag = 'scoped memory for tpu_custom_call.1']
    #allocation4 [shape = 's32[1]{0}', space=sflag, size = 0x4, scoped, tag = 'scoped memory for tpu_custom_call.1']
    #allocation5 [shape = 'u8[8192]{0}', space=vmem, size = 0x2000, scoped, tag = 'input window, operand 1, single buffered']
    #allocation6 [shape = 's32[1]{0}', space=sflag, size = 0x4, scoped, tag = 'scoped memory for tpu_custom_call.1']
    #allocation7 [shape = 'u8[1024]{0}', space=vmem, size = 0x400, scoped, tag = 'input window, operand 2, single buffered']
    #allocation8 [shape = 'u8[2048]{0}', space=smem, size = 0x800, scoped, tag = 'input window, operand 3, single buffered']
    %9 = vsyncpa [#allocation3], 0
    %10 = vsyncpa [#allocation6], 0
    %11 = vsyncpa [#allocation4], 0
    // Predicated region
    $region2: #{tpu_custom_call.1} parent=1 // pred_check
      _
    $region3: #{tpu_custom_call.1} parent=1 // pred_check_branch
      %13 = sbr.rel (0) target = $region5
    $region4: #{tpu_custom_call.1} parent=1 // pred_region
      %15 = vsyncadd [#allocation3], 0
      %s17 = sshll.u32 %s0, 4
      %s18 = int_to_ptr.hbm [resolvable:$true] %s17
      %s19 = sshll.u32 [#allocation2], 4
      %s20 = int_to_ptr.vmem [resolvable:$true] %s19
      %22 = dma.hbm_to_vmem [thread:$0]  %s18, 256, %s20, [#allocation3]
    $region5: #{tpu_custom_call.1} parent=1 // pred_fallthru
      _
    // Predicated region
    $region6: #{tpu_custom_call.1} parent=1 // pred_check
      _
    $region7: #{tpu_custom_call.1} parent=1 // pred_check_branch
      %24 = sbr.rel (0) target = $region9
    $region8: #{tpu_custom_call.1} parent=1 // pred_region
      %26 = vsyncadd [#allocation6], 0
      %s28 = sshll.u32 %s1, 4
      %s29 = int_to_ptr.hbm [resolvable:$true] %s28
      %s30 = sshll.u32 [#allocation5], 4
      %s31 = int_to_ptr.vmem [resolvable:$true] %s30
      %33 = dma.hbm_to_vmem [thread:$0]  %s29, 256, %s31, [#allocation6]
    $region9: #{tpu_custom_call.1} parent=1 // pred_fallthru
      _
    // Predicated region
    $region10: #{tpu_custom_call.1} parent=1 // pred_check
      _
    $region11: #{tpu_custom_call.1} parent=1 // pred_check_branch
      %35 = sbr.rel (0) target = $region13
    $region12: #{tpu_custom_call.1} parent=1 // pred_region
      %37 = vsyncadd [#allocation6], 0
      %s39 = sshll.u32 %s2, 4
      %s40 = int_to_ptr.hbm [resolvable:$true] %s39
      %s41 = sshll.u32 [#allocation7], 4
      %s42 = int_to_ptr.vmem [resolvable:$true] %s41
      %44 = dma.hbm_to_vmem [thread:$0]  %s40, 32, %s42, [#allocation6]
    $region13: #{tpu_custom_call.1} parent=1 // pred_fallthru
      _
    // Predicated region
    $region14: #{tpu_custom_call.1} parent=1 // pred_check
      _
    $region15: #{tpu_custom_call.1} parent=1 // pred_check_branch
      %46 = sbr.rel (0) target = $region17
    $region16: #{tpu_custom_call.1} parent=1 // pred_region
      %48 = vsyncadd [#allocation4], 0
      %s50 = sshll.u32 %s3, 4
      %s51 = int_to_ptr.hbm [resolvable:$true] %s50
      %53 = dma.hbm_to_smem %s51, 64, [#allocation8], [#allocation4]
    $region17: #{tpu_custom_call.1} parent=1 // pred_fallthru
      _
    // Predicated region
    $region18: #{tpu_custom_call.1} parent=1 // pred_check
      _
    $region19: #{tpu_custom_call.1} parent=1 // pred_check_branch
      %55 = sbr.rel (0) target = $region21
    $region20: #{tpu_custom_call.1} parent=1 // pred_region
      %57 = dma.done [#allocation3], 256
    $region21: #{tpu_custom_call.1} parent=1 // pred_fallthru
      _
    // Predicated region
    $region22: #{tpu_custom_call.1} parent=1 // pred_check
      _
    $region23: #{tpu_custom_call.1} parent=1 // pred_check_branch
      %59 = sbr.rel (0) target = $region25
    $region24: #{tpu_custom_call.1} parent=1 // pred_region
      %61 = dma.done [#allocation6], 256
    $region25: #{tpu_custom_call.1} parent=1 // pred_fallthru
      _
    // Predicated region
    $region26: #{tpu_custom_call.1} parent=1 // pred_check
      _
    $region27: #{tpu_custom_call.1} parent=1 // pred_check_branch
      %63 = sbr.rel (0) target = $region29
    $region28: #{tpu_custom_call.1} parent=1 // pred_region
      %65 = dma.done [#allocation6], 32
    $region29: #{tpu_custom_call.1} parent=1 // pred_fallthru
      _
    // Predicated region
    $region30: #{tpu_custom_call.1} parent=1 // pred_check
      _
    $region31: #{tpu_custom_call.1} parent=1 // pred_check_branch
      %67 = sbr.rel (0) target = $region33
    $region32: #{tpu_custom_call.1} parent=1 // pred_region
      %69 = dma.done [#allocation4], 64
    $region33: #{tpu_custom_call.1} parent=1 // pred_fallthru
      _
    %70 = sfence
    %v71 = vld [vmem:[#allocation2] sm:$0xff]
    %v72 = vld [vmem:[#allocation2 + $0x8] sm:$0xff]
    %v73 = vld [vmem:[#allocation5] sm:$0xff]
    %v74 = vld [vmem:[#allocation5 + $0x8] sm:$0xff]
    %v75 = vld [vmem:[#allocation7] sm:$0x3]
    %77 = vset.pattern.permute.xlu0 0
    %78 = vperm.xlu0 %77, %v75
    %v79 = vpop.permute.xlu0 %78
    %v81 = vunpack.c.l.s4 269488144
    %v82 = vunpack.c.0.s8 %v81
    %v83 = vperm.slane %v79, %v82
    %v85 = vmul.f32 %v71, %v83
    %v86 = vmul.f32 %v72, %v83
    %87 = vset.pattern.permute.xlu0 1
    %88 = vperm.xlu0 %87, %v75
    %v89 = vpop.permute.xlu0 %88
    %93 = vst [vmem:[#allocation1] ss:$4 sm:$0xff] %v73
    %s94 = scalar_lea.vmem [#allocation1], 32
    %95 = vst [vmem:[%s94] ss:$4 sm:$0xff] %v74
    %v96 = vld.sshfl [vmem:[#allocation1] sm:$0xff pattern:$0x73625140]
    %v97 = vld.sshfl [vmem:[#allocation1 + $0x8] sm:$0xff pattern:$0x73625140]
    %v98 = vld.sshfl [vmem:[#allocation1 + $0x10] sm:$0xff pattern:$0x73625140]
    %v99 = vld.sshfl [vmem:[#allocation1 + $0x18] sm:$0xff pattern:$0x73625140]
    %v100 = vld.sshfl [vmem:[#allocation1 + $0x20] sm:$0xff pattern:$0x73625140]
    %v101 = vld.sshfl [vmem:[#allocation1 + $0x28] sm:$0xff pattern:$0x73625140]
    %v102 = vld.sshfl [vmem:[#allocation1 + $0x30] sm:$0xff pattern:$0x73625140]
    %v103 = vld.sshfl [vmem:[#allocation1 + $0x38] sm:$0xff pattern:$0x73625140]
    %v112 = vmul.f32 %v89, %v96
    %v113 = vmul.f32 %v89, %v97
    %v114 = vmul.f32 %v89, %v98
    %v115 = vmul.f32 %v89, %v99
    %v116 = vmul.f32 %v89, %v100
    %v117 = vmul.f32 %v89, %v101
    %v118 = vmul.f32 %v89, %v102
    %v119 = vmul.f32 %v89, %v103
    %v128 = vrot.slane %v113, 6
    %v129 = vrot.slane %v114, 4
    %v130 = vrot.slane %v115, 2
    %v131 = vrot.slane %v117, 6
    %v132 = vrot.slane %v118, 4
    %v133 = vrot.slane %v119, 2
    %vm134 = vcmask 1041408
    %v135 = vsel %vm134, %v112, %v128
    %vm136 = vcmask 1045508
    %v137 = vsel %vm136, %v129, %v130
    %vm138 = vcmask 1043456
    %v139 = vsel %vm138, %v135, %v137
    %v140 = vsel %vm134, %v116, %v131
    %v141 = vsel %vm136, %v132, %v133
    %v142 = vsel %vm138, %v140, %v141
    %v145 = vadd.f32 %v85, %v139
    %v146 = vadd.f32 %v86, %v142
    %s147 = sld [smem:[#allocation8]]
    %v148 = vstv %s147
    %v149 = vmul.f32 %v148, %v145
    %s150 = sld [smem:[#allocation8 + $0x1]]
    %v151 = vstv %s150
    %v153 = vrot.slane %v145, 4
    %v155 = vmul.f32 %v151, %v153
    %v156 = vadd.f32 %v149, %v155
    %s157 = sld [smem:[#allocation8 + $0x2]]
    %v158 = vstv %s157
    %v159 = vmul.f32 %v158, %v146
    %v160 = vadd.f32 %v156, %v159
    %s161 = sld [smem:[#allocation8 + $0x3]]
    %v162 = vstv %s161
    %v164 = vrot.slane %v146, 4
    %v166 = vmul.f32 %v162, %v164
    %v167 = vadd.f32 %v160, %v166
    %168 = vset.pattern.permute.xlu0 3
    %169 = vperm.xlu0 %168, %v75
    %v170 = vpop.permute.xlu0 %169
    %v172 = vunpack.c.l.s4 269488144
    %v173 = vunpack.c.0.s8 %v172
    %v174 = vperm.slane %v170, %v173
    %v176 = vadd.f32 %v167, %v174
    %v177 = vsub.f32 %v176, %v73
    %v178 = vmul.f32 %v177, %v177
    %s179 = sld [smem:[#allocation8 + $0x80]]
    %v180 = vstv %s179
    %v181 = vmul.f32 %v180, %v145
    %s182 = sld [smem:[#allocation8 + $0x81]]
    %v183 = vstv %s182
    %v184 = vmul.f32 %v183, %v153
    %v185 = vadd.f32 %v181, %v184
    %s186 = sld [smem:[#allocation8 + $0x82]]
    %v187 = vstv %s186
    %v188 = vmul.f32 %v187, %v146
    %v189 = vadd.f32 %v185, %v188
    %s190 = sld [smem:[#allocation8 + $0x83]]
    %v191 = vstv %s190
    %v192 = vmul.f32 %v191, %v164
    %v193 = vadd.f32 %v189, %v192
    %194 = vset.pattern.permute.xlu0 4
    %195 = vperm.xlu0 %194, %v75
    %v196 = vpop.permute.xlu0 %195
    %v198 = vunpack.c.l.s4 269488144
    %v199 = vunpack.c.0.s8 %v198
    %v200 = vperm.slane %v196, %v199
    %v202 = vadd.f32 %v193, %v200
    %v203 = vrot.slane %v73, 4
    %v205 = vsub.f32 %v202, %v203
    %v206 = vmul.f32 %v205, %v205
    %v207 = vadd.f32 %v178, %v206
    %s208 = sld [smem:[#allocation8 + $0x100]]
    %v209 = vstv %s208
    %v210 = vmul.f32 %v209, %v145
    %s211 = sld [smem:[#allocation8 + $0x101]]
    %v212 = vstv %s211
    %v213 = vmul.f32 %v212, %v153
    %v214 = vadd.f32 %v210, %v213
    %s215 = sld [smem:[#allocation8 + $0x102]]
    %v216 = vstv %s215
    %v217 = vmul.f32 %v216, %v146
    %v218 = vadd.f32 %v214, %v217
    %s219 = sld [smem:[#allocation8 + $0x103]]
    %v220 = vstv %s219
    %v221 = vmul.f32 %v220, %v164
    %v222 = vadd.f32 %v218, %v221
    %223 = vset.pattern.permute.xlu0 5
    %224 = vperm.xlu0 %223, %v75
    %v225 = vpop.permute.xlu0 %224
    %v227 = vunpack.c.l.s4 269488144
    %v228 = vunpack.c.0.s8 %v227
    %v229 = vperm.slane %v225, %v228
    %v231 = vadd.f32 %v222, %v229
    %v232 = vsub.f32 %v231, %v74
    %v233 = vmul.f32 %v232, %v232
    %v234 = vadd.f32 %v207, %v233
    %s235 = sld [smem:[#allocation8 + $0x180]]
    %v236 = vstv %s235
    %v237 = vmul.f32 %v236, %v145
    %s238 = sld [smem:[#allocation8 + $0x181]]
    %v239 = vstv %s238
    %v240 = vmul.f32 %v239, %v153
    %v241 = vadd.f32 %v237, %v240
    %s242 = sld [smem:[#allocation8 + $0x182]]
    %v243 = vstv %s242
    %v244 = vmul.f32 %v243, %v146
    %v245 = vadd.f32 %v241, %v244
    %s246 = sld [smem:[#allocation8 + $0x183]]
    %v247 = vstv %s246
    %v248 = vmul.f32 %v247, %v164
    %v249 = vadd.f32 %v245, %v248
    %250 = vset.pattern.permute.xlu0 6
    %251 = vperm.xlu0 %250, %v75
    %v252 = vpop.permute.xlu0 %251
    %v254 = vunpack.c.l.s4 269488144
    %v255 = vunpack.c.0.s8 %v254
    %v256 = vperm.slane %v252, %v255
    %v258 = vadd.f32 %v249, %v256
    %v259 = vrot.slane %v74, 4
    %v261 = vsub.f32 %v258, %v259
    %v262 = vmul.f32 %v261, %v261
    %v263 = vadd.f32 %v234, %v262
    %265 = vst [vmem:[#allocation1] ss:$4 sm:$0xff] %v263
    %v266 = vld.sshfl [vmem:[#allocation1] sm:$0xff pattern:$0x73625140]
    %v267 = vld.sshfl [vmem:[#allocation1 + $0x8] sm:$0xff pattern:$0x73625140]
    %v270 = vsel %vm134, %v266, 0.0
    %v271 = vsel %vm134, %v267, 0.0
    %v272 = vadd.f32 %v270, %v271
    %273 = vadd.xlane.f32.xlu0 %v272
    %v274 = vpop.xlane.xlu0 %273
    %v275 = vmul.f32 %v274, %v75
    %277 = vrot.lane.b32.xlu0 %v275, 126
    %v278 = vpop.permute.xlu0 %277
    %vm280 = vcmask 1024
    %281 = vst.msk [vmem:[%s4] sm:$0x3] %vm280, %v278
    // Predicated region
    $region34: #{tpu_custom_call.1} parent=1 // pred_check
      _
    $region35: #{tpu_custom_call.1} parent=1 // pred_check_branch
      %283 = sbr.rel (0) target = $region37
    $region36: #{tpu_custom_call.1} parent=1 // pred_region
      _
    $region37: #{tpu_custom_call.1} parent=1 // pred_fallthru
      _
    // Predicated region
    $region38: #{tpu_custom_call.1} parent=1 // pred_check
      _
    $region39: #{tpu_custom_call.1} parent=1 // pred_check_branch
      %285 = sbr.rel (0) target = $region41
    $region40: #{tpu_custom_call.1} parent=1 // pred_region
      _
    $region41: #{tpu_custom_call.1} parent=1 // pred_fallthru
      _
    %286 = vsyncpa [#allocation3], 1
    %287 = vsyncpa [#allocation6], 1
    %288 = vsyncpa [#allocation4], 1

</llo_original>
